<compile_context>
chip_gen: v7x
topology: tpu7x:2x2x1
jax: 0.10.0
libtpu: 0.0.40
codegen_flags: <defaults>
</compile_context>

<pallas_src>
import functools

import jax
import jax.numpy as jnp
from jax.experimental import pallas as pl
from jax.experimental.pallas import tpu as pltpu


def _round_up(x, m):
    return (x + m - 1) // m * m


def _mlp_fused_kernel(x_ref, w0_ref, b0_ref, wr_ref, br_ref, ws_ref, bs_ref,
                      o_ref, *, num_rest):
    """One batch tile through the whole MLP.

    x_ref  : (TM, Dp)        input tile (padded input_dim)
    w0_ref : (Dp, Hp)        first layer weight, already [in, out] layout
    b0_ref : (1, Hp)
    wr_ref : (R, Hp, Hp)     remaining hidden-layer weights (R >= 1, may be dummy)
    br_ref : (R, 1, Hp)
    ws_ref : (Dp, Hp)        shortcut weight
    bs_ref : (1, Hp)
    o_ref  : (TM, Hp)
    """
    x = x_ref[...]

    # Layer 0: Linear + ReLU (f32 accumulate on the MXU, no transpose).
    h = jnp.dot(x, w0_ref[...], preferred_element_type=jnp.float32) + b0_ref[...]
    h = jnp.maximum(h, 0.0)

    # Remaining hidden layers (statically unrolled; num_rest is small).
    for i in range(num_rest):
        h = jnp.dot(h, wr_ref[i], preferred_element_type=jnp.float32) + br_ref[i]
        h = jnp.maximum(h, 0.0)

    # Shortcut Linear fused with the residual add.
    sc = jnp.dot(x, ws_ref[...], preferred_element_type=jnp.float32) + bs_ref[...]
    o_ref[...] = (h + sc).astype(o_ref.dtype)


def init_mlp_params(key, input_dim, hidden_dim, num_mlp_layers):
    """Init mirroring the PyTorch MLP, but weights stored as [in, out]
    (i.e. the transpose of torch.nn.Linear.weight, done once here)."""
    params = {"net": [], "shortcut": None}
    dims_in = [input_dim] + [hidden_dim] * (num_mlp_layers - 1)
    for d_in in dims_in:
        key, kw, kb = jax.random.split(key, 3)
        bound = 1.0 / jnp.sqrt(d_in)
        w = jax.random.uniform(kw, (d_in, hidden_dim), jnp.float32, -bound, bound)
        b = jax.random.uniform(kb, (hidden_dim,), jnp.float32, -bound, bound)
        params["net"].append((w, b))
    key, kw, kb = jax.random.split(key, 3)
    bound = 1.0 / jnp.sqrt(input_dim)
    ws = jax.random.uniform(kw, (input_dim, hidden_dim), jnp.float32, -bound, bound)
    bs = jax.random.uniform(kb, (hidden_dim,), jnp.float32, -bound, bound)
    params["shortcut"] = (ws, bs)
    return params


@jax.jit
def mlp_forward(params, x):
    net = params["net"]
    w0, b0 = net[0]
    rest = net[1:]
    ws, bs = params["shortcut"]

    batch, input_dim = x.shape
    hidden_dim = w0.shape[1]
    num_rest = len(rest)

    # Lane/sublane-friendly padded sizes.
    Dp = _round_up(input_dim, 128)
    Hp = _round_up(hidden_dim, 128)
    TM = min(128, _round_up(batch, 8))
    Mp = _round_up(batch, TM)
    R = max(1, num_rest)  # keep a dummy slab if there are no extra layers

    f32 = jnp.float32
    xp = jnp.zeros((Mp, Dp), f32).at[:batch, :input_dim].set(x.astype(f32))
    w0p = jnp.zeros((Dp, Hp), f32).at[:input_dim, :hidden_dim].set(w0)
    b0p = jnp.zeros((1, Hp), f32).at[0, :hidden_dim].set(b0)
    wsp = jnp.zeros((Dp, Hp), f32).at[:input_dim, :hidden_dim].set(ws)
    bsp = jnp.zeros((1, Hp), f32).at[0, :hidden_dim].set(bs)
    wrp = jnp.zeros((R, Hp, Hp), f32)
    brp = jnp.zeros((R, 1, Hp), f32)
    for i, (w, b) in enumerate(rest):
        wrp = wrp.at[i, :hidden_dim, :hidden_dim].set(w)
        brp = brp.at[i, 0, :hidden_dim].set(b)

    grid = (Mp // TM,)

    # Advisory cost estimate (unpadded logical work).
    flops = 2 * batch * (2 * input_dim * hidden_dim
                         + num_rest * hidden_dim * hidden_dim)
    bytes_accessed = 4 * (batch * input_dim + batch * hidden_dim
                          + 2 * input_dim * hidden_dim
                          + num_rest * hidden_dim * hidden_dim
                          + (2 + num_rest) * hidden_dim)

    # VMEM budget (double-buffered activation tiles + resident weight tiles).
    vmem_bytes = 4 * (2 * TM * Dp + 2 * TM * Hp
                      + 2 * (2 * Dp * Hp + R * Hp * Hp + (2 + R) * Hp))
    cp_kwargs = dict(dimension_semantics=("parallel",))
    if vmem_bytes > 32 * 1024 * 1024:
        # TODO(synk): for very large hidden/input dims, tile N/K with a K-grid
        # accumulator instead of relying on whole-weight residency.
        cp_kwargs["vmem_limit_bytes"] = min(vmem_bytes, 64 * 1024 * 1024)

    kernel = functools.partial(_mlp_fused_kernel, num_rest=num_rest)
    out_padded = pl.pallas_call(
        kernel,
        out_shape=jax.ShapeDtypeStruct((Mp, Hp), jnp.float32),
        grid_spec=pltpu.PrefetchScalarGridSpec(
            num_scalar_prefetch=0,
            grid=grid,
            in_specs=[
                pl.BlockSpec((TM, Dp), lambda m: (m, 0)),        # x tile
                pl.BlockSpec((Dp, Hp), lambda m: (0, 0)),        # w0 (resident)
                pl.BlockSpec((1, Hp), lambda m: (0, 0)),         # b0
                pl.BlockSpec((R, Hp, Hp), lambda m: (0, 0, 0)),  # hidden weights
                pl.BlockSpec((R, 1, Hp), lambda m: (0, 0, 0)),   # hidden biases
                pl.BlockSpec((Dp, Hp), lambda m: (0, 0)),        # shortcut weight
                pl.BlockSpec((1, Hp), lambda m: (0, 0)),         # shortcut bias
            ],
            out_specs=pl.BlockSpec((TM, Hp), lambda m: (m, 0)),
        ),
        compiler_params=pltpu.CompilerParams(**cp_kwargs),
        cost_estimate=pl.CostEstimate(
            flops=flops, transcendentals=0, bytes_accessed=bytes_accessed),
    )(xp, w0p, b0p, wrp, brp, wsp, bsp)

    return out_padded[:batch, :hidden_dim]


def mlp_reference(params, x):
    h = x
    for (w, b) in params["net"]:
        h = jnp.maximum(h @ w + b, 0.0)
    ws, bs = params["shortcut"]
    return h + (x @ ws + bs)


if __name__ == "__main__":
    batch = 8
    input_dim = 16
    hidden_dim = 32
    num_mlp_layers = 3

    key = jax.random.PRNGKey(0)
    key, kx = jax.random.split(key)
    x = jax.random.normal(kx, (batch, input_dim), jnp.float32)

    params = init_mlp_params(key, input_dim, hidden_dim, num_mlp_layers)

    out = mlp_forward(params, x)
    out = jax.block_until_ready(out)

    ref = mlp_reference(params, x)
    assert out.shape == (batch, hidden_dim)
    assert jnp.allclose(out, ref, atol=1e-5, rtol=1e-5), "mismatch vs reference"

    print("KERNEL_OK")
</pallas_src>

<mosaic_0001>
module attributes {stable_mosaic.version = 11 : i64} {
  func.func @_mlp_fused_kernel(%arg0: i32, %arg1: memref<8x128xf32, #tpu.memory_space<vmem>>, %arg2: memref<128x128xf32, #tpu.memory_space<vmem>>, %arg3: memref<1x128xf32, #tpu.memory_space<vmem>>, %arg4: memref<2x128x128xf32, #tpu.memory_space<vmem>>, %arg5: memref<2x1x128xf32, #tpu.memory_space<vmem>>, %arg6: memref<128x128xf32, #tpu.memory_space<vmem>>, %arg7: memref<1x128xf32, #tpu.memory_space<vmem>>, %arg8: memref<8x128xf32, #tpu.memory_space<vmem>>) attributes {dimension_semantics = [#tpu.dimension_semantics<parallel>], iteration_bounds = array<i64: 1>, scalar_prefetch = 0 : i64, scratch_operands = 0 : i64, tpu.core_type = #tpu.core_type<tc>, window_params = [{transform_indices = @transform_0, window_bounds = array<i64: 8, 128>}, {pipeline_mode = #tpu.pipeline_mode<synchronous>, transform_indices = @transform_1, window_bounds = array<i64: 128, 128>}, {pipeline_mode = #tpu.pipeline_mode<synchronous>, transform_indices = @transform_2, window_bounds = array<i64: 1, 128>}, {pipeline_mode = #tpu.pipeline_mode<synchronous>, transform_indices = @transform_3, window_bounds = array<i64: 2, 128, 128>}, {pipeline_mode = #tpu.pipeline_mode<synchronous>, transform_indices = @transform_4, window_bounds = array<i64: 2, 1, 128>}, {pipeline_mode = #tpu.pipeline_mode<synchronous>, transform_indices = @transform_5, window_bounds = array<i64: 128, 128>}, {pipeline_mode = #tpu.pipeline_mode<synchronous>, transform_indices = @transform_6, window_bounds = array<i64: 1, 128>}, {transform_indices = @transform_7, window_bounds = array<i64: 8, 128>}]} {
    %c0 = arith.constant 0 : index
    %c0_0 = arith.constant 0 : index
    %0 = vector.load %arg1[%c0, %c0_0] : memref<8x128xf32, #tpu.memory_space<vmem>>, vector<8x128xf32>
    %c0_1 = arith.constant 0 : index
    %c0_2 = arith.constant 0 : index
    %1 = vector.load %arg2[%c0_1, %c0_2] : memref<128x128xf32, #tpu.memory_space<vmem>>, vector<128x128xf32>
    %cst = arith.constant dense<0.000000e+00> : vector<8x128xf32>
    %2 = tpu.matmul %0, %1, %cst {dimension_numbers = #tpu.dot_dimension_numbers<[1], [0], [0], [1], [0, 0, 1, 1], [], []>} : vector<8x128xf32>, vector<128x128xf32>, vector<8x128xf32> -> vector<8x128xf32>
    %c0_3 = arith.constant 0 : index
    %c0_4 = arith.constant 0 : index
    %3 = vector.load %arg3[%c0_3, %c0_4] : memref<1x128xf32, #tpu.memory_space<vmem>>, vector<1x128xf32>
    %4 = vector.broadcast %3 : vector<1x128xf32> to vector<8x128xf32>
    %5 = arith.addf %2, %4 : vector<8x128xf32>
    %cst_5 = arith.constant 0.000000e+00 : f32
    %6 = vector.broadcast %cst_5 : f32 to vector<8x128xf32>
    %7 = arith.maximumf %5, %6 : vector<8x128xf32>
    %c0_6 = arith.constant 0 : index
    %c0_7 = arith.constant 0 : index
    %c0_8 = arith.constant 0 : index
    %8 = vector.load %arg4[%c0_6, %c0_7, %c0_8] : memref<2x128x128xf32, #tpu.memory_space<vmem>>, vector<1x128x128xf32>
    %9 = vector.shape_cast %8 : vector<1x128x128xf32> to vector<128x128xf32>
    %cst_9 = arith.constant dense<0.000000e+00> : vector<8x128xf32>
    %10 = tpu.matmul %7, %9, %cst_9 {dimension_numbers = #tpu.dot_dimension_numbers<[1], [0], [0], [1], [0, 0, 1, 1], [], []>} : vector<8x128xf32>, vector<128x128xf32>, vector<8x128xf32> -> vector<8x128xf32>
    %c0_10 = arith.constant 0 : index
    %c0_11 = arith.constant 0 : index
    %c0_12 = arith.constant 0 : index
    %11 = vector.load %arg5[%c0_10, %c0_11, %c0_12] : memref<2x1x128xf32, #tpu.memory_space<vmem>>, vector<1x1x128xf32>
    %12 = vector.shape_cast %11 : vector<1x1x128xf32> to vector<1x128xf32>
    %13 = vector.broadcast %12 : vector<1x128xf32> to vector<8x128xf32>
    %14 = arith.addf %10, %13 : vector<8x128xf32>
    %cst_13 = arith.constant 0.000000e+00 : f32
    %15 = vector.broadcast %cst_13 : f32 to vector<8x128xf32>
    %16 = arith.maximumf %14, %15 : vector<8x128xf32>
    %c1 = arith.constant 1 : index
    %c0_14 = arith.constant 0 : index
    %c0_15 = arith.constant 0 : index
    %17 = vector.load %arg4[%c1, %c0_14, %c0_15] : memref<2x128x128xf32, #tpu.memory_space<vmem>>, vector<1x128x128xf32>
    %18 = vector.shape_cast %17 : vector<1x128x128xf32> to vector<128x128xf32>
    %cst_16 = arith.constant dense<0.000000e+00> : vector<8x128xf32>
    %19 = tpu.matmul %16, %18, %cst_16 {dimension_numbers = #tpu.dot_dimension_numbers<[1], [0], [0], [1], [0, 0, 1, 1], [], []>} : vector<8x128xf32>, vector<128x128xf32>, vector<8x128xf32> -> vector<8x128xf32>
    %c1_17 = arith.constant 1 : index
    %c0_18 = arith.constant 0 : index
    %c0_19 = arith.constant 0 : index
    %20 = vector.load %arg5[%c1_17, %c0_18, %c0_19] : memref<2x1x128xf32, #tpu.memory_space<vmem>>, vector<1x1x128xf32>
    %21 = vector.shape_cast %20 : vector<1x1x128xf32> to vector<1x128xf32>
    %22 = vector.broadcast %21 : vector<1x128xf32> to vector<8x128xf32>
    %23 = arith.addf %19, %22 : vector<8x128xf32>
    %cst_20 = arith.constant 0.000000e+00 : f32
    %24 = vector.broadcast %cst_20 : f32 to vector<8x128xf32>
    %25 = arith.maximumf %23, %24 : vector<8x128xf32>
    %c0_21 = arith.constant 0 : index
    %c0_22 = arith.constant 0 : index
    %26 = vector.load %arg6[%c0_21, %c0_22] : memref<128x128xf32, #tpu.memory_space<vmem>>, vector<128x128xf32>
    %cst_23 = arith.constant dense<0.000000e+00> : vector<8x128xf32>
    %27 = tpu.matmul %0, %26, %cst_23 {dimension_numbers = #tpu.dot_dimension_numbers<[1], [0], [0], [1], [0, 0, 1, 1], [], []>} : vector<8x128xf32>, vector<128x128xf32>, vector<8x128xf32> -> vector<8x128xf32>
    %c0_24 = arith.constant 0 : index
    %c0_25 = arith.constant 0 : index
    %28 = vector.load %arg7[%c0_24, %c0_25] : memref<1x128xf32, #tpu.memory_space<vmem>>, vector<1x128xf32>
    %29 = vector.broadcast %28 : vector<1x128xf32> to vector<8x128xf32>
    %30 = arith.addf %27, %29 : vector<8x128xf32>
    %31 = arith.addf %25, %30 : vector<8x128xf32>
    %c0_26 = arith.constant 0 : index
    %c0_27 = arith.constant 0 : index
    %32 = vector.load %arg8[%c0_26, %c0_27] : memref<8x128xf32, #tpu.memory_space<vmem>>, vector<8x128xf32>
    tpu.vector_store %arg8[%c0_26, %c0_27], %31 {strides = array<i32>} : memref<8x128xf32, #tpu.memory_space<vmem>>, vector<8x128xf32>,
    return
  }
  func.func @transform_0(%arg0: i32) -> (i32, i32) {
    %c0_i32 = arith.constant 0 : i32
    %c0_i32_0 = arith.constant 0 : i32
    return %arg0, %c0_i32 : i32, i32
  }
  func.func @transform_1(%arg0: i32) -> (i32, i32) {
    %c0_i32 = arith.constant 0 : i32
    %c0_i32_0 = arith.constant 0 : i32
    %c0_i32_1 = arith.constant 0 : i32
    return %c0_i32, %c0_i32_0 : i32, i32
  }
  func.func @transform_2(%arg0: i32) -> (i32, i32) {
    %c0_i32 = arith.constant 0 : i32
    %c0_i32_0 = arith.constant 0 : i32
    %c0_i32_1 = arith.constant 0 : i32
    return %c0_i32, %c0_i32_0 : i32, i32
  }
  func.func @transform_3(%arg0: i32) -> (i32, i32, i32) {
    %c0_i32 = arith.constant 0 : i32
    %c0_i32_0 = arith.constant 0 : i32
    %c0_i32_1 = arith.constant 0 : i32
    %c0_i32_2 = arith.constant 0 : i32
    return %c0_i32, %c0_i32_0, %c0_i32_1 : i32, i32, i32
  }
  func.func @transform_4(%arg0: i32) -> (i32, i32, i32) {
    %c0_i32 = arith.constant 0 : i32
    %c0_i32_0 = arith.constant 0 : i32
    %c0_i32_1 = arith.constant 0 : i32
    %c0_i32_2 = arith.constant 0 : i32
    return %c0_i32, %c0_i32_0, %c0_i32_1 : i32, i32, i32
  }
  func.func @transform_5(%arg0: i32) -> (i32, i32) {
    %c0_i32 = arith.constant 0 : i32
    %c0_i32_0 = arith.constant 0 : i32
    %c0_i32_1 = arith.constant 0 : i32
    return %c0_i32, %c0_i32_0 : i32, i32
  }
  func.func @transform_6(%arg0: i32) -> (i32, i32) {
    %c0_i32 = arith.constant 0 : i32
    %c0_i32_0 = arith.constant 0 : i32
    %c0_i32_1 = arith.constant 0 : i32
    return %c0_i32, %c0_i32_0 : i32, i32
  }
  func.func @transform_7(%arg0: i32) -> (i32, i32) {
    %c0_i32 = arith.constant 0 : i32
    %c0_i32_0 = arith.constant 0 : i32
    return %arg0, %c0_i32 : i32, i32
  }
}

</mosaic_0001>

<llo_original>
// kernel: mlp_forward.1
$region0: #{mlp_forward.1}
  #allocation0 [shape = 'u32[]', space=smem, size = 0x4, offset = 0x4, fixed_abs, tag = 'smem constant byte address 0x4 - core index']
  #allocation1 [shape = 'u32[144,128]{1,0:T(1,128)}', space=vmem, size = 0x12000, scoped, tag = 'internal scratch']
  %s0 = inlined_call_operand.vmem [shape: f32[8,128], index: 0, kind: input, shape index: {}]
  %s1 = inlined_call_operand.vmem [shape: f32[128,128], index: 1, kind: input, shape index: {}]
  %s2 = inlined_call_operand.vmem [shape: f32[1,128], index: 2, kind: input, shape index: {}]
  %s3 = inlined_call_operand.vmem [shape: f32[2,128,128], index: 3, kind: input, shape index: {}]
  %s4 = inlined_call_operand.vmem [shape: f32[2,1,128], index: 4, kind: input, shape index: {}]
  %s5 = inlined_call_operand.vmem [shape: f32[128,128], index: 5, kind: input, shape index: {}]
  %s6 = inlined_call_operand.vmem [shape: f32[1,128], index: 6, kind: input, shape index: {}]
  %s7 = inlined_call_operand.hbm [shape: f32[8,128], index: 7, kind: output, shape index: {}]
  %s8 = sld [smem:[#allocation0]]
  $region38: #{mlp_forward.1} parent=0
    _
  %s10 = ssub.s32 1, %s8
  %s11 = scalar_select 0, %s10, %s8
  $region1: #{mlp_forward.1} parent=0
    #allocation2 [shape = 'u8[4096]{0}', space=vmem, size = 0x1000, scoped, tag = 'output window, operand 0, single buffered']
    #allocation3 [shape = 's32[1]{0}', space=sflag, size = 0x4, scoped, tag = 'scoped memory for mlp_forward.1']
    %12 = vsyncpa [#allocation3], 0
    // Predicated region
    $region2: #{mlp_forward.1} parent=1 // pred_check
      _
    $region3: #{mlp_forward.1} parent=1 // pred_check_branch
      %14 = sbr.rel (0) target = $region5
    $region4: #{mlp_forward.1} parent=1 // pred_region
      _
    $region5: #{mlp_forward.1} parent=1 // pred_fallthru
      _
    // Predicated region
    $region6: #{mlp_forward.1} parent=1 // pred_check
      _
    $region7: #{mlp_forward.1} parent=1 // pred_check_branch
      %16 = sbr.rel (0) target = $region9
    $region8: #{mlp_forward.1} parent=1 // pred_region
      _
    $region9: #{mlp_forward.1} parent=1 // pred_fallthru
      _
    // Predicated region
    $region10: #{mlp_forward.1} parent=1 // pred_check
      _
    $region11: #{mlp_forward.1} parent=1 // pred_check_branch
      %18 = sbr.rel (0) target = $region13
    $region12: #{mlp_forward.1} parent=1 // pred_region
      _
    $region13: #{mlp_forward.1} parent=1 // pred_fallthru
      _
    // Predicated region
    $region14: #{mlp_forward.1} parent=1 // pred_check
      _
    $region15: #{mlp_forward.1} parent=1 // pred_check_branch
      %20 = sbr.rel (0) target = $region17
    $region16: #{mlp_forward.1} parent=1 // pred_region
      _
    $region17: #{mlp_forward.1} parent=1 // pred_fallthru
      _
    // Predicated region
    $region18: #{mlp_forward.1} parent=1 // pred_check
      _
    $region19: #{mlp_forward.1} parent=1 // pred_check_branch
      %22 = sbr.rel (0) target = $region21
    $region20: #{mlp_forward.1} parent=1 // pred_region
      _
    $region21: #{mlp_forward.1} parent=1 // pred_fallthru
      _
    // Predicated region
    $region22: #{mlp_forward.1} parent=1 // pred_check
      _
    $region23: #{mlp_forward.1} parent=1 // pred_check_branch
      %24 = sbr.rel (0) target = $region25
    $region24: #{mlp_forward.1} parent=1 // pred_region
      _
    $region25: #{mlp_forward.1} parent=1 // pred_fallthru
      _
    // Predicated region
    $region26: #{mlp_forward.1} parent=1 // pred_check
      _
    $region27: #{mlp_forward.1} parent=1 // pred_check_branch
      %26 = sbr.rel (0) target = $region29
    $region28: #{mlp_forward.1} parent=1 // pred_region
      _
    $region29: #{mlp_forward.1} parent=1 // pred_fallthru
      _
    %v27 = vld [vmem:[%s0] sm:$0xff]
    %v28 = vld [vmem:[%s1] sm:$0xff]
    %v29 = vld [vmem:[%s1 + $0x8] sm:$0xff]
    %v30 = vld [vmem:[%s1 + $0x10] sm:$0xff]
    %v31 = vld [vmem:[%s1 + $0x18] sm:$0xff]
    %v32 = vld [vmem:[%s1 + $0x20] sm:$0xff]
    %v33 = vld [vmem:[%s1 + $0x28] sm:$0xff]
    %v34 = vld [vmem:[%s1 + $0x30] sm:$0xff]
    %v35 = vld [vmem:[%s1 + $0x38] sm:$0xff]
    %v36 = vld [vmem:[%s1 + $0x40] sm:$0xff]
    %v37 = vld [vmem:[%s1 + $0x48] sm:$0xff]
    %v38 = vld [vmem:[%s1 + $0x50] sm:$0xff]
    %v39 = vld [vmem:[%s1 + $0x58] sm:$0xff]
    %v40 = vld [vmem:[%s1 + $0x60] sm:$0xff]
    %v41 = vld [vmem:[%s1 + $0x68] sm:$0xff]
    %v42 = vld [vmem:[%s1 + $0x70] sm:$0xff]
    %v43 = vld [vmem:[%s1 + $0x78] sm:$0xff]
    %v44 = vld [vmem:[%s2] sm:$0x1]
    %v46 = vlaneseq
    %v47 = vshrl.u32 %v46, 7
    %v48 = vsub.s32 0, %v47
    %v49 = vrot.slane %v44, %v48
    %51 = vmatprep.subr.mxu0 0.0
    %52 = vmatpush1.msra.mxu0 %v28
    %53 = vmatprep.subr.mxu0 0.0
    %54 = vmatpush1.msra.mxu0 %v29
    %55 = vmatprep.subr.mxu0 0.0
    %56 = vmatpush1.msra.mxu0 %v30
    %57 = vmatprep.subr.mxu0 0.0
    %58 = vmatpush1.msra.mxu0 %v31
    %59 = vmatprep.subr.mxu0 0.0
    %60 = vmatpush1.msra.mxu0 %v32
    %61 = vmatprep.subr.mxu0 0.0
    %62 = vmatpush1.msra.mxu0 %v33
    %63 = vmatprep.subr.mxu0 0.0
    %64 = vmatpush1.msra.mxu0 %v34
    %65 = vmatprep.subr.mxu0 0.0
    %66 = vmatpush1.msra.mxu0 %v35
    %67 = vmatprep.subr.mxu0 0.0
    %68 = vmatpush1.msra.mxu0 %v36
    %69 = vmatprep.subr.mxu0 0.0
    %70 = vmatpush1.msra.mxu0 %v37
    %71 = vmatprep.subr.mxu0 0.0
    %72 = vmatpush1.msra.mxu0 %v38
    %73 = vmatprep.subr.mxu0 0.0
    %74 = vmatpush1.msra.mxu0 %v39
    %75 = vmatprep.subr.mxu0 0.0
    %76 = vmatpush1.msra.mxu0 %v40
    %77 = vmatprep.subr.mxu0 0.0
    %78 = vmatpush1.msra.mxu0 %v41
    %79 = vmatprep.subr.mxu0 0.0
    %80 = vmatpush1.msra.mxu0 %v42
    %81 = vmatprep.subr.mxu0 0.0
    %82 = vmatpush1.msra.mxu0 %v43
    %83 = vmatprep.subr.mxu0 0.0
    %84 = vmatpush1.msra.mxu0 0.0
    %85 = vmatprep.subr.mxu0 0.0
    %86 = vmatpush1.msra.mxu0 0.0
    %87 = vmatprep.subr.mxu0 0.0
    %88 = vmatpush1.msra.mxu0 0.0
    %89 = vmatprep.subr.mxu0 0.0
    %90 = vmatpush1.msra.mxu0 0.0
    %91 = vmatprep.subr.mxu0 0.0
    %92 = vmatpush1.msra.mxu0 0.0
    %93 = vmatprep.subr.mxu0 0.0
    %94 = vmatpush1.msra.mxu0 0.0
    %95 = vmatprep.subr.mxu0 0.0
    %96 = vmatpush1.msra.mxu0 0.0
    %97 = vmatprep.subr.mxu0 0.0
    %98 = vmatpush1.msra.mxu0 0.0
    %99 = vmatprep.subr.mxu0 0.0
    %100 = vmatpush1.msra.mxu0 0.0
    %101 = vmatprep.subr.mxu0 0.0
    %102 = vmatpush1.msra.mxu0 0.0
    %103 = vmatprep.subr.mxu0 0.0
    %104 = vmatpush1.msra.mxu0 0.0
    %105 = vmatprep.subr.mxu0 0.0
    %106 = vmatpush1.msra.mxu0 0.0
    %107 = vmatprep.subr.mxu0 0.0
    %108 = vmatpush1.msra.mxu0 0.0
    %109 = vmatprep.subr.mxu0 0.0
    %110 = vmatpush1.msra.mxu0 0.0
    %111 = vmatprep.subr.mxu0 0.0
    %112 = vmatpush1.msra.mxu0 0.0
    %113 = vmatprep.subr.mxu0 0.0
    %114 = vmatpush1.msra.mxu0 0.0
    %115 = vmatprep.mubr.f32.mxu0 0.0
    %116 = vmatmul.mubr.f32.gmra.mrb[0].mxu0 %v27
    %v117 = vpop.f32.mrb[0].mxu0
    %v118 = vadd.f32 %v49, %v117
    %v119 = vpop.f32.mrb[0].mxu0
    %120 = vdwg.mxu0
    %v121 = vmax.f32 %v118, 0.0
    %v122 = vld [vmem:[%s3] sm:$0xff]
    %v123 = vld [vmem:[%s3 + $0x8] sm:$0xff]
    %v124 = vld [vmem:[%s3 + $0x10] sm:$0xff]
    %v125 = vld [vmem:[%s3 + $0x18] sm:$0xff]
    %v126 = vld [vmem:[%s3 + $0x20] sm:$0xff]
    %v127 = vld [vmem:[%s3 + $0x28] sm:$0xff]
    %v128 = vld [vmem:[%s3 + $0x30] sm:$0xff]
    %v129 = vld [vmem:[%s3 + $0x38] sm:$0xff]
    %v130 = vld [vmem:[%s3 + $0x40] sm:$0xff]
    %v131 = vld [vmem:[%s3 + $0x48] sm:$0xff]
    %v132 = vld [vmem:[%s3 + $0x50] sm:$0xff]
    %v133 = vld [vmem:[%s3 + $0x58] sm:$0xff]
    %v134 = vld [vmem:[%s3 + $0x60] sm:$0xff]
    %v135 = vld [vmem:[%s3 + $0x68] sm:$0xff]
    %v136 = vld [vmem:[%s3 + $0x70] sm:$0xff]
    %v137 = vld [vmem:[%s3 + $0x78] sm:$0xff]
    %v138 = vld [vmem:[%s4] sm:$0x1]
    %v140 = vlaneseq
    %v141 = vshrl.u32 %v140, 7
    %v142 = vsub.s32 0, %v141
    %v143 = vrot.slane %v138, %v142
    %145 = vmatprep.subr.mxu0 0.0
    %146 = vmatpush1.msra.mxu0 %v122
    %147 = vmatprep.subr.mxu0 0.0
    %148 = vmatpush1.msra.mxu0 %v123
    %149 = vmatprep.subr.mxu0 0.0
    %150 = vmatpush1.msra.mxu0 %v124
    %151 = vmatprep.subr.mxu0 0.0
    %152 = vmatpush1.msra.mxu0 %v125
    %153 = vmatprep.subr.mxu0 0.0
    %154 = vmatpush1.msra.mxu0 %v126
    %155 = vmatprep.subr.mxu0 0.0
    %156 = vmatpush1.msra.mxu0 %v127
    %157 = vmatprep.subr.mxu0 0.0
    %158 = vmatpush1.msra.mxu0 %v128
    %159 = vmatprep.subr.mxu0 0.0
    %160 = vmatpush1.msra.mxu0 %v129
    %161 = vmatprep.subr.mxu0 0.0
    %162 = vmatpush1.msra.mxu0 %v130
    %163 = vmatprep.subr.mxu0 0.0
    %164 = vmatpush1.msra.mxu0 %v131
    %165 = vmatprep.subr.mxu0 0.0
    %166 = vmatpush1.msra.mxu0 %v132
    %167 = vmatprep.subr.mxu0 0.0
    %168 = vmatpush1.msra.mxu0 %v133
    %169 = vmatprep.subr.mxu0 0.0
    %170 = vmatpush1.msra.mxu0 %v134
    %171 = vmatprep.subr.mxu0 0.0
    %172 = vmatpush1.msra.mxu0 %v135
    %173 = vmatprep.subr.mxu0 0.0
    %174 = vmatpush1.msra.mxu0 %v136
    %175 = vmatprep.subr.mxu0 0.0
    %176 = vmatpush1.msra.mxu0 %v137
    %177 = vmatprep.subr.mxu0 0.0
    %178 = vmatpush1.msra.mxu0 0.0
    %179 = vmatprep.subr.mxu0 0.0
    %180 = vmatpush1.msra.mxu0 0.0
    %181 = vmatprep.subr.mxu0 0.0
    %182 = vmatpush1.msra.mxu0 0.0
    %183 = vmatprep.subr.mxu0 0.0
    %184 = vmatpush1.msra.mxu0 0.0
    %185 = vmatprep.subr.mxu0 0.0
    %186 = vmatpush1.msra.mxu0 0.0
    %187 = vmatprep.subr.mxu0 0.0
    %188 = vmatpush1.msra.mxu0 0.0
    %189 = vmatprep.subr.mxu0 0.0
    %190 = vmatpush1.msra.mxu0 0.0
    %191 = vmatprep.subr.mxu0 0.0
    %192 = vmatpush1.msra.mxu0 0.0
    %193 = vmatprep.subr.mxu0 0.0
    %194 = vmatpush1.msra.mxu0 0.0
    %195 = vmatprep.subr.mxu0 0.0
    %196 = vmatpush1.msra.mxu0 0.0
    %197 = vmatprep.subr.mxu0 0.0
    %198 = vmatpush1.msra.mxu0 0.0
    %199 = vmatprep.subr.mxu0 0.0
    %200 = vmatpush1.msra.mxu0 0.0
    %201 = vmatprep.subr.mxu0 0.0
    %202 = vmatpush1.msra.mxu0 0.0
    %203 = vmatprep.subr.mxu0 0.0
    %204 = vmatpush1.msra.mxu0 0.0
    %205 = vmatprep.subr.mxu0 0.0
    %206 = vmatpush1.msra.mxu0 0.0
    %207 = vmatprep.subr.mxu0 0.0
    %208 = vmatpush1.msra.mxu0 0.0
    %209 = vmatprep.mubr.f32.mxu0 0.0
    %210 = vmatmul.mubr.f32.gmra.mrb[0].mxu0 %v121
    %v211 = vpop.f32.mrb[0].mxu0
    %v212 = vadd.f32 %v143, %v211
    %v213 = vpop.f32.mrb[0].mxu0
    %214 = vdwg.mxu0
    %v215 = vmax.f32 %v212, 0.0
    %s216 = scalar_lea.vmem %s3, 128
    %v217 = vld [vmem:[%s216] sm:$0xff]
    %v218 = vld [vmem:[%s216 + $0x8] sm:$0xff]
    %v219 = vld [vmem:[%s216 + $0x10] sm:$0xff]
    %v220 = vld [vmem:[%s216 + $0x18] sm:$0xff]
    %v221 = vld [vmem:[%s216 + $0x20] sm:$0xff]
    %v222 = vld [vmem:[%s216 + $0x28] sm:$0xff]
    %v223 = vld [vmem:[%s216 + $0x30] sm:$0xff]
    %v224 = vld [vmem:[%s216 + $0x38] sm:$0xff]
    %v225 = vld [vmem:[%s216 + $0x40] sm:$0xff]
    %v226 = vld [vmem:[%s216 + $0x48] sm:$0xff]
    %v227 = vld [vmem:[%s216 + $0x50] sm:$0xff]
    %v228 = vld [vmem:[%s216 + $0x58] sm:$0xff]
    %v229 = vld [vmem:[%s216 + $0x60] sm:$0xff]
    %v230 = vld [vmem:[%s216 + $0x68] sm:$0xff]
    %v231 = vld [vmem:[%s216 + $0x70] sm:$0xff]
    %v232 = vld [vmem:[%s216 + $0x78] sm:$0xff]
    %s233 = scalar_lea.vmem %s4, 1
    %v234 = vld [vmem:[%s233] sm:$0x1]
    %v236 = vlaneseq
    %v237 = vshrl.u32 %v236, 7
    %v238 = vsub.s32 0, %v237
    %v239 = vrot.slane %v234, %v238
    %241 = vmatprep.subr.mxu0 0.0
    %242 = vmatpush1.msra.mxu0 %v217
    %243 = vmatprep.subr.mxu0 0.0
    %244 = vmatpush1.msra.mxu0 %v218
    %245 = vmatprep.subr.mxu0 0.0
    %246 = vmatpush1.msra.mxu0 %v219
    %247 = vmatprep.subr.mxu0 0.0
    %248 = vmatpush1.msra.mxu0 %v220
    %249 = vmatprep.subr.mxu0 0.0
    %250 = vmatpush1.msra.mxu0 %v221
    %251 = vmatprep.subr.mxu0 0.0
    %252 = vmatpush1.msra.mxu0 %v222
    %253 = vmatprep.subr.mxu0 0.0
    %254 = vmatpush1.msra.mxu0 %v223
    %255 = vmatprep.subr.mxu0 0.0
    %256 = vmatpush1.msra.mxu0 %v224
    %257 = vmatprep.subr.mxu0 0.0
    %258 = vmatpush1.msra.mxu0 %v225
    %259 = vmatprep.subr.mxu0 0.0
    %260 = vmatpush1.msra.mxu0 %v226
    %261 = vmatprep.subr.mxu0 0.0
    %262 = vmatpush1.msra.mxu0 %v227
    %263 = vmatprep.subr.mxu0 0.0
    %264 = vmatpush1.msra.mxu0 %v228
    %265 = vmatprep.subr.mxu0 0.0
    %266 = vmatpush1.msra.mxu0 %v229
    %267 = vmatprep.subr.mxu0 0.0
    %268 = vmatpush1.msra.mxu0 %v230
    %269 = vmatprep.subr.mxu0 0.0
    %270 = vmatpush1.msra.mxu0 %v231
    %271 = vmatprep.subr.mxu0 0.0
    %272 = vmatpush1.msra.mxu0 %v232
    %273 = vmatprep.subr.mxu0 0.0
    %274 = vmatpush1.msra.mxu0 0.0
    %275 = vmatprep.subr.mxu0 0.0
    %276 = vmatpush1.msra.mxu0 0.0
    %277 = vmatprep.subr.mxu0 0.0
    %278 = vmatpush1.msra.mxu0 0.0
    %279 = vmatprep.subr.mxu0 0.0
    %280 = vmatpush1.msra.mxu0 0.0
    %281 = vmatprep.subr.mxu0 0.0
    %282 = vmatpush1.msra.mxu0 0.0
    %283 = vmatprep.subr.mxu0 0.0
    %284 = vmatpush1.msra.mxu0 0.0
    %285 = vmatprep.subr.mxu0 0.0
    %286 = vmatpush1.msra.mxu0 0.0
    %287 = vmatprep.subr.mxu0 0.0
    %288 = vmatpush1.msra.mxu0 0.0
    %289 = vmatprep.subr.mxu0 0.0
    %290 = vmatpush1.msra.mxu0 0.0
    %291 = vmatprep.subr.mxu0 0.0
    %292 = vmatpush1.msra.mxu0 0.0
    %293 = vmatprep.subr.mxu0 0.0
    %294 = vmatpush1.msra.mxu0 0.0
    %295 = vmatprep.subr.mxu0 0.0
    %296 = vmatpush1.msra.mxu0 0.0
    %297 = vmatprep.subr.mxu0 0.0
    %298 = vmatpush1.msra.mxu0 0.0
    %299 = vmatprep.subr.mxu0 0.0
    %300 = vmatpush1.msra.mxu0 0.0
    %301 = vmatprep.subr.mxu0 0.0
    %302 = vmatpush1.msra.mxu0 0.0
    %303 = vmatprep.subr.mxu0 0.0
    %304 = vmatpush1.msra.mxu0 0.0
    %305 = vmatprep.mubr.f32.mxu0 0.0
    %306 = vmatmul.mubr.f32.gmra.mrb[0].mxu0 %v215
    %v307 = vpop.f32.mrb[0].mxu0
    %v308 = vadd.f32 %v239, %v307
    %v309 = vpop.f32.mrb[0].mxu0
    %310 = vdwg.mxu0
    %v311 = vmax.f32 %v308, 0.0
    %v312 = vld [vmem:[%s5] sm:$0xff]
    %v313 = vld [vmem:[%s5 + $0x8] sm:$0xff]
    %v314 = vld [vmem:[%s5 + $0x10] sm:$0xff]
    %v315 = vld [vmem:[%s5 + $0x18] sm:$0xff]
    %v316 = vld [vmem:[%s5 + $0x20] sm:$0xff]
    %v317 = vld [vmem:[%s5 + $0x28] sm:$0xff]
    %v318 = vld [vmem:[%s5 + $0x30] sm:$0xff]
    %v319 = vld [vmem:[%s5 + $0x38] sm:$0xff]
    %v320 = vld [vmem:[%s5 + $0x40] sm:$0xff]
    %v321 = vld [vmem:[%s5 + $0x48] sm:$0xff]
    %v322 = vld [vmem:[%s5 + $0x50] sm:$0xff]
    %v323 = vld [vmem:[%s5 + $0x58] sm:$0xff]
    %v324 = vld [vmem:[%s5 + $0x60] sm:$0xff]
    %v325 = vld [vmem:[%s5 + $0x68] sm:$0xff]
    %v326 = vld [vmem:[%s5 + $0x70] sm:$0xff]
    %v327 = vld [vmem:[%s5 + $0x78] sm:$0xff]
    %v328 = vld [vmem:[%s6] sm:$0x1]
    %v330 = vlaneseq
    %v331 = vshrl.u32 %v330, 7
    %v332 = vsub.s32 0, %v331
    %v333 = vrot.slane %v328, %v332
    %335 = vmatprep.subr.mxu0 0.0
    %336 = vmatpush1.msra.mxu0 %v312
    %337 = vmatprep.subr.mxu0 0.0
    %338 = vmatpush1.msra.mxu0 %v313
    %339 = vmatprep.subr.mxu0 0.0
    %340 = vmatpush1.msra.mxu0 %v314
    %341 = vmatprep.subr.mxu0 0.0
    %342 = vmatpush1.msra.mxu0 %v315
    %343 = vmatprep.subr.mxu0 0.0
    %344 = vmatpush1.msra.mxu0 %v316
    %345 = vmatprep.subr.mxu0 0.0
    %346 = vmatpush1.msra.mxu0 %v317
    %347 = vmatprep.subr.mxu0 0.0
    %348 = vmatpush1.msra.mxu0 %v318
    %349 = vmatprep.subr.mxu0 0.0
    %350 = vmatpush1.msra.mxu0 %v319
    %351 = vmatprep.subr.mxu0 0.0
    %352 = vmatpush1.msra.mxu0 %v320
    %353 = vmatprep.subr.mxu0 0.0
    %354 = vmatpush1.msra.mxu0 %v321
    %355 = vmatprep.subr.mxu0 0.0
    %356 = vmatpush1.msra.mxu0 %v322
    %357 = vmatprep.subr.mxu0 0.0
    %358 = vmatpush1.msra.mxu0 %v323
    %359 = vmatprep.subr.mxu0 0.0
    %360 = vmatpush1.msra.mxu0 %v324
    %361 = vmatprep.subr.mxu0 0.0
    %362 = vmatpush1.msra.mxu0 %v325
    %363 = vmatprep.subr.mxu0 0.0
    %364 = vmatpush1.msra.mxu0 %v326
    %365 = vmatprep.subr.mxu0 0.0
    %366 = vmatpush1.msra.mxu0 %v327
    %367 = vmatprep.subr.mxu0 0.0
    %368 = vmatpush1.msra.mxu0 0.0
    %369 = vmatprep.subr.mxu0 0.0
    %370 = vmatpush1.msra.mxu0 0.0
    %371 = vmatprep.subr.mxu0 0.0
    %372 = vmatpush1.msra.mxu0 0.0
    %373 = vmatprep.subr.mxu0 0.0
    %374 = vmatpush1.msra.mxu0 0.0
    %375 = vmatprep.subr.mxu0 0.0
    %376 = vmatpush1.msra.mxu0 0.0
    %377 = vmatprep.subr.mxu0 0.0
    %378 = vmatpush1.msra.mxu0 0.0
    %379 = vmatprep.subr.mxu0 0.0
    %380 = vmatpush1.msra.mxu0 0.0
    %381 = vmatprep.subr.mxu0 0.0
    %382 = vmatpush1.msra.mxu0 0.0
    %383 = vmatprep.subr.mxu0 0.0
    %384 = vmatpush1.msra.mxu0 0.0
    %385 = vmatprep.subr.mxu0 0.0
    %386 = vmatpush1.msra.mxu0 0.0
    %387 = vmatprep.subr.mxu0 0.0
    %388 = vmatpush1.msra.mxu0 0.0
    %389 = vmatprep.subr.mxu0 0.0
    %390 = vmatpush1.msra.mxu0 0.0
    %391 = vmatprep.subr.mxu0 0.0
    %392 = vmatpush1.msra.mxu0 0.0
    %393 = vmatprep.subr.mxu0 0.0
    %394 = vmatpush1.msra.mxu0 0.0
    %395 = vmatprep.subr.mxu0 0.0
    %396 = vmatpush1.msra.mxu0 0.0
    %397 = vmatprep.subr.mxu0 0.0
    %398 = vmatpush1.msra.mxu0 0.0
    %399 = vmatprep.mubr.f32.mxu0 0.0
    %400 = vmatmul.mubr.f32.gmra.mrb[0].mxu0 %v27
    %v401 = vpop.f32.mrb[0].mxu0
    %v402 = vadd.f32 %v333, %v401
    %v403 = vpop.f32.mrb[0].mxu0
    %404 = vdwg.mxu0
    %v405 = vadd.f32 %v311, %v402
    %406 = vst [vmem:[#allocation2] sm:$0xff] %v405
    // Predicated region
    $region30: #{mlp_forward.1} parent=1 // pred_check
      _
    $region31: #{mlp_forward.1} parent=1 // pred_check_branch
      %408 = sbr.rel (0) target = $region33
    $region32: #{mlp_forward.1} parent=1 // pred_region
      %s410 = ssub.s32 128, 128
      %411 = vsyncadd [#allocation3], %s410
      %s413 = sshll.u32 [#allocation2], 4
      %s414 = int_to_ptr.vmem [resolvable:$true] %s413
      %416 = dma.vmem_to_hbm [thread:$0]  %s414, 128, %s7, [#allocation3]
    $region33: #{mlp_forward.1} parent=1 // pred_fallthru
      _
    // Predicated region
    $region34: #{mlp_forward.1} parent=1 // pred_check
      _
    $region35: #{mlp_forward.1} parent=1 // pred_check_branch
      %418 = sbr.rel (0) target = $region37
    $region36: #{mlp_forward.1} parent=1 // pred_region
      %419 = dma.done [#allocation3], 128
    $region37: #{mlp_forward.1} parent=1 // pred_fallthru
      _
    %420 = vsyncpa [#allocation3], 1

</llo_original>
